<compile_context>
chip_gen: v7x
topology: tpu7x:2x2x1
jax: 0.10.0
libtpu: 0.0.40
codegen_flags: <defaults>
</compile_context>

<pallas_src>
import functools
import math

import jax
import jax.numpy as jnp
import numpy as np
from jax.experimental import pallas as pl
from jax.experimental.pallas import tpu as pltpu


# ---------------------------------------------------------------------------
# Kernel B: node-adaptive parameter generation, plane-major output.
#   W_aug[j] = E @ pool_aug[j]          (N, Cout) per plane j
# pool_aug stacks the K*Cin weight slices (k-major) followed by the bias slice,
# zero-padded to a multiple of TJ planes.
# ---------------------------------------------------------------------------
def _pool_kernel(TJ, e_ref, wp_ref, w_out_ref):
    e = e_ref[...].astype(jnp.bfloat16)                      # (N, D), VMEM-resident
    for t in range(TJ):                                      # static -> unrolled
        w_out_ref[t] = jnp.dot(e, wp_ref[t].astype(jnp.bfloat16),
                               preferred_element_type=jnp.float32)


# ---------------------------------------------------------------------------
# Fused kernel: per-batch support construction + aggregation + node-adaptive
# contraction, writing the final (N, Cout) plane for this batch directly.
#   A      = softmax(relu(E_t @ E_t^T), axis=-1)                     (N, N)
#   z_0    = X,  z_1 = A @ X,  z_k = 2*A@z_{k-1} - z_{k-2}           (N, Cin)
#   out    = W_aug[K*Cin] + sum_{k,i} z_k[:, i] * W_aug[k*Cin + i]   (N, Cout)
# W_aug is batch-invariant (constant index_map -> fetched into VMEM once).
# ---------------------------------------------------------------------------
def _fused_gcn_kernel(K, Cin, et_ref, x_ref, w_ref, out_ref):
    KC = K * Cin
    et = et_ref[0].astype(jnp.bfloat16)           # (N, D)
    x = x_ref[0]                                  # (N, Cin)  f32

    # supports = softmax(relu(E_t @ E_t^T), axis=-1)
    # (bf16 operands, f32 accumulation on the MXU; softmax math stays f32).
    s = jax.lax.dot_general(et, et, (((1,), (1,)), ((), ())),
                            preferred_element_type=jnp.float32)      # (N, N)
    s = jnp.maximum(s, 0.0)
    s = s - jnp.max(s, axis=-1, keepdims=True)
    e = jnp.exp(s)
    a1 = (e * pl.reciprocal(jnp.sum(e, axis=-1, keepdims=True), approx=True)
          ).astype(jnp.bfloat16)

    def contract(z, k, acc):
        # Per-node adaptive contraction on the VPU (K*Cin is tiny):
        #   acc[n, o] += sum_i z[n, i] * W_aug[k*Cin + i][n, o]
        for i in range(Cin):                       # static -> unrolled
            acc = acc + z[:, i:i + 1] * w_ref[k * Cin + i]
        return acc

    # acc starts from the adaptive bias plane.
    acc = w_ref[KC]                                # (N, Cout) f32

    # k = 0: identity support -> aggregated features are X itself (no matmul).
    acc = contract(x, 0, acc)

    # k = 1: supports @ X.
    z_prev2 = x
    z_prev = jnp.dot(a1, x.astype(jnp.bfloat16),
                     preferred_element_type=jnp.float32)              # (N, Cin)
    acc = contract(z_prev, 1, acc)

    # k >= 2: Chebyshev recursion on aggregated features (static K -> unrolled).
    for k in range(2, K):
        z_new = 2.0 * jnp.dot(a1, z_prev.astype(jnp.bfloat16),
                              preferred_element_type=jnp.float32) - z_prev2
        acc = contract(z_new, k, acc)
        z_prev2, z_prev = z_prev, z_new

    out_ref[0] = acc                               # full (N, Cout) plane store


def gcn_forward(X, E, E_t, weights_pool, bias_pool, *, K):
    B, N, Cin = X.shape
    D = E.shape[1]
    Cout = weights_pool.shape[-1]
    assert weights_pool.shape == (D, K, Cin, Cout)
    assert K >= 2, "forward as written assumes K >= 2"

    KC = K * Cin
    n_planes = KC + 1                               # K*Cin weight planes + bias plane

    # Augmented pool in plane-major layout (tiny one-time XLA reshuffle of params):
    #   pool_aug[j] = weights_pool[:, k, i, :] for j = k*Cin + i;  pool_aug[KC] = bias_pool
    pool_aug = jnp.concatenate(
        [weights_pool.reshape(D, KC, Cout), bias_pool[:, None, :]], axis=1)  # (D, KC+1, Cout)
    pool_aug = jnp.transpose(pool_aug, (1, 0, 2))                            # (KC+1, D, Cout)

    TJ = 8                                          # planes per pool-kernel grid step
    KCp = TJ * pl.cdiv(n_planes, TJ)
    if KCp > n_planes:
        pool_aug = jnp.concatenate(
            [pool_aug, jnp.zeros((KCp - n_planes, D, Cout), pool_aug.dtype)], axis=0)

    # --- Kernel B: adaptive weight/bias planes, grid over plane tiles ---
    W_aug = pl.pallas_call(
        functools.partial(_pool_kernel, TJ),
        out_shape=jax.ShapeDtypeStruct((KCp, N, Cout), jnp.float32),
        grid=(KCp // TJ,),
        in_specs=[
            pl.BlockSpec((N, D), lambda j: (0, 0)),            # E, VMEM-resident
            pl.BlockSpec((TJ, D, Cout), lambda j: (j, 0, 0)),
        ],
        out_specs=pl.BlockSpec((TJ, N, Cout), lambda j: (j, 0, 0)),
        compiler_params=pltpu.CompilerParams(dimension_semantics=("parallel",)),
    )(E, pool_aug)

    # --- Fused kernel: grid over batch; W_aug batch-invariant (constant index_map) ---
    out = pl.pallas_call(
        functools.partial(_fused_gcn_kernel, K, Cin),
        out_shape=jax.ShapeDtypeStruct((B, N, Cout), jnp.float32),
        grid=(B,),
        in_specs=[
            pl.BlockSpec((1, N, D), lambda b: (b, 0, 0)),
            pl.BlockSpec((1, N, Cin), lambda b: (b, 0, 0)),
            pl.BlockSpec((KCp, N, Cout), lambda b: (0, 0, 0)),   # VMEM-resident planes
        ],
        out_specs=pl.BlockSpec((1, N, Cout), lambda b: (b, 0, 0)),
        compiler_params=pltpu.CompilerParams(
            dimension_semantics=("parallel",),
            vmem_limit_bytes=64 * 1024 * 1024,
        ),
    )(E_t, X, W_aug)

    return out                                     # (B, N, Cout)


def gcn_reference(X, E, E_t, weights_pool, bias_pool, *, K):
    """Pure-JAX f32 transcription of the PyTorch forward (Temb=True, dyG=False)."""
    B, N, _ = X.shape
    supports = jax.nn.softmax(
        jax.nn.relu(jnp.einsum("bnd,bmd->bnm", E_t, E_t)), axis=2)
    eye = jnp.broadcast_to(jnp.eye(N, dtype=X.dtype), (B, N, N))
    support_set = [eye, supports]
    for _ in range(2, K):
        support_set.append(2.0 * jnp.matmul(supports, support_set[-1]) - support_set[-2])
    A = jnp.stack(support_set, axis=1)                            # (B, K, N, N)
    W = jnp.einsum("nd,dkio->nkio", E, weights_pool)              # (N, K, Cin, Cout)
    bias = E @ bias_pool                                          # (N, Cout)
    X_G = jnp.einsum("bknm,bmc->bknc", A, X)                      # (B, K, N, Cin)
    X_G = jnp.transpose(X_G, (0, 2, 1, 3))                        # (B, N, K, Cin)
    return jnp.einsum("bnki,nkio->bno", X_G, W) + bias            # (B, N, Cout)


if __name__ == "__main__":
    B, N, Cin, Cout, K, D = 2, 16, 4, 8, 3, 8

    key = jax.random.PRNGKey(0)
    k_x, k_e, k_et, k_w = jax.random.split(key, 4)

    X = jax.random.normal(k_x, (B, N, Cin), dtype=jnp.float32)
    E = jax.random.normal(k_e, (N, D), dtype=jnp.float32)
    E_t = jax.random.normal(k_et, (B, N, D), dtype=jnp.float32)

    # glorot(weights_pool): uniform(-stdv, stdv), stdv = sqrt(6 / (size(-2)+size(-1)))
    stdv = math.sqrt(6.0 / (Cin + Cout))
    weights_pool = jax.random.uniform(
        k_w, (D, K, Cin, Cout), minval=-stdv, maxval=stdv, dtype=jnp.float32)
    # zeros(bias_pool)
    bias_pool = jnp.zeros((D, Cout), dtype=jnp.float32)

    out = gcn_forward(X, E, E_t, weights_pool, bias_pool, K=K)
    out = jax.block_until_ready(out)

    ref = gcn_reference(X, E, E_t, weights_pool, bias_pool, K=K)
    # Tolerance loosened vs. the f32 reference because MXU operands are bf16
    # (f32 accumulation) and the softmax denominator uses the approximate EUP reciprocal.
    np.testing.assert_allclose(np.asarray(out), np.asarray(ref), rtol=5e-2, atol=5e-2)

    print("KERNEL_OK")
</pallas_src>

<mosaic_0001>
module attributes {stable_mosaic.version = 11 : i64} {
  func.func @_pool_kernel(%arg0: i32, %arg1: memref<16x8xf32, #tpu.memory_space<vmem>>, %arg2: memref<8x8x8xf32, #tpu.memory_space<vmem>>, %arg3: memref<8x16x8xf32, #tpu.memory_space<vmem>>) attributes {dimension_semantics = [#tpu.dimension_semantics<parallel>], iteration_bounds = array<i64: 2>, scalar_prefetch = 0 : i64, scratch_operands = 0 : i64, tpu.core_type = #tpu.core_type<tc>, window_params = [{pipeline_mode = #tpu.pipeline_mode<synchronous>, transform_indices = @transform_0, window_bounds = array<i64: 16, 8>}, {transform_indices = @transform_1, window_bounds = array<i64: 8, 8, 8>}, {transform_indices = @transform_2, window_bounds = array<i64: 8, 16, 8>}]} {
    %c0 = arith.constant 0 : index
    %c0_0 = arith.constant 0 : index
    %0 = vector.load %arg1[%c0, %c0_0] : memref<16x8xf32, #tpu.memory_space<vmem>>, vector<16x8xf32>
    %1 = arith.truncf %0 : vector<16x8xf32> to vector<16x8xbf16>
    %c0_1 = arith.constant 0 : index
    %c0_2 = arith.constant 0 : index
    %c0_3 = arith.constant 0 : index
    %2 = vector.load %arg2[%c0_1, %c0_2, %c0_3] : memref<8x8x8xf32, #tpu.memory_space<vmem>>, vector<1x8x8xf32>
    %3 = vector.shape_cast %2 : vector<1x8x8xf32> to vector<8x8xf32>
    %4 = arith.truncf %3 : vector<8x8xf32> to vector<8x8xbf16>
    %cst = arith.constant dense<0.000000e+00> : vector<16x8xf32>
    %5 = tpu.matmul %1, %4, %cst {dimension_numbers = #tpu.dot_dimension_numbers<[1], [0], [0], [1], [0, 0, 1, 1], [], []>} : vector<16x8xbf16>, vector<8x8xbf16>, vector<16x8xf32> -> vector<16x8xf32>
    %c0_4 = arith.constant 0 : index
    %c0_5 = arith.constant 0 : index
    %c0_6 = arith.constant 0 : index
    %6 = vector.load %arg3[%c0_4, %c0_5, %c0_6] : memref<8x16x8xf32, #tpu.memory_space<vmem>>, vector<1x16x8xf32>
    %7 = vector.shape_cast %6 : vector<1x16x8xf32> to vector<16x8xf32>
    %8 = vector.shape_cast %5 : vector<16x8xf32> to vector<1x16x8xf32>
    tpu.vector_store %arg3[%c0_4, %c0_5, %c0_6], %8 {strides = array<i32>} : memref<8x16x8xf32, #tpu.memory_space<vmem>>, vector<1x16x8xf32>,
    %c1 = arith.constant 1 : index
    %c0_7 = arith.constant 0 : index
    %c0_8 = arith.constant 0 : index
    %9 = vector.load %arg2[%c1, %c0_7, %c0_8] : memref<8x8x8xf32, #tpu.memory_space<vmem>>, vector<1x8x8xf32>
    %10 = vector.shape_cast %9 : vector<1x8x8xf32> to vector<8x8xf32>
    %11 = arith.truncf %10 : vector<8x8xf32> to vector<8x8xbf16>
    %cst_9 = arith.constant dense<0.000000e+00> : vector<16x8xf32>
    %12 = tpu.matmul %1, %11, %cst_9 {dimension_numbers = #tpu.dot_dimension_numbers<[1], [0], [0], [1], [0, 0, 1, 1], [], []>} : vector<16x8xbf16>, vector<8x8xbf16>, vector<16x8xf32> -> vector<16x8xf32>
    %c1_10 = arith.constant 1 : index
    %c0_11 = arith.constant 0 : index
    %c0_12 = arith.constant 0 : index
    %13 = vector.load %arg3[%c1_10, %c0_11, %c0_12] : memref<8x16x8xf32, #tpu.memory_space<vmem>>, vector<1x16x8xf32>
    %14 = vector.shape_cast %13 : vector<1x16x8xf32> to vector<16x8xf32>
    %15 = vector.shape_cast %12 : vector<16x8xf32> to vector<1x16x8xf32>
    tpu.vector_store %arg3[%c1_10, %c0_11, %c0_12], %15 {strides = array<i32>} : memref<8x16x8xf32, #tpu.memory_space<vmem>>, vector<1x16x8xf32>,
    %c2 = arith.constant 2 : index
    %c0_13 = arith.constant 0 : index
    %c0_14 = arith.constant 0 : index
    %16 = vector.load %arg2[%c2, %c0_13, %c0_14] : memref<8x8x8xf32, #tpu.memory_space<vmem>>, vector<1x8x8xf32>
    %17 = vector.shape_cast %16 : vector<1x8x8xf32> to vector<8x8xf32>
    %18 = arith.truncf %17 : vector<8x8xf32> to vector<8x8xbf16>
    %cst_15 = arith.constant dense<0.000000e+00> : vector<16x8xf32>
    %19 = tpu.matmul %1, %18, %cst_15 {dimension_numbers = #tpu.dot_dimension_numbers<[1], [0], [0], [1], [0, 0, 1, 1], [], []>} : vector<16x8xbf16>, vector<8x8xbf16>, vector<16x8xf32> -> vector<16x8xf32>
    %c2_16 = arith.constant 2 : index
    %c0_17 = arith.constant 0 : index
    %c0_18 = arith.constant 0 : index
    %20 = vector.load %arg3[%c2_16, %c0_17, %c0_18] : memref<8x16x8xf32, #tpu.memory_space<vmem>>, vector<1x16x8xf32>
    %21 = vector.shape_cast %20 : vector<1x16x8xf32> to vector<16x8xf32>
    %22 = vector.shape_cast %19 : vector<16x8xf32> to vector<1x16x8xf32>
    tpu.vector_store %arg3[%c2_16, %c0_17, %c0_18], %22 {strides = array<i32>} : memref<8x16x8xf32, #tpu.memory_space<vmem>>, vector<1x16x8xf32>,
    %c3 = arith.constant 3 : index
    %c0_19 = arith.constant 0 : index
    %c0_20 = arith.constant 0 : index
    %23 = vector.load %arg2[%c3, %c0_19, %c0_20] : memref<8x8x8xf32, #tpu.memory_space<vmem>>, vector<1x8x8xf32>
    %24 = vector.shape_cast %23 : vector<1x8x8xf32> to vector<8x8xf32>
    %25 = arith.truncf %24 : vector<8x8xf32> to vector<8x8xbf16>
    %cst_21 = arith.constant dense<0.000000e+00> : vector<16x8xf32>
    %26 = tpu.matmul %1, %25, %cst_21 {dimension_numbers = #tpu.dot_dimension_numbers<[1], [0], [0], [1], [0, 0, 1, 1], [], []>} : vector<16x8xbf16>, vector<8x8xbf16>, vector<16x8xf32> -> vector<16x8xf32>
    %c3_22 = arith.constant 3 : index
    %c0_23 = arith.constant 0 : index
    %c0_24 = arith.constant 0 : index
    %27 = vector.load %arg3[%c3_22, %c0_23, %c0_24] : memref<8x16x8xf32, #tpu.memory_space<vmem>>, vector<1x16x8xf32>
    %28 = vector.shape_cast %27 : vector<1x16x8xf32> to vector<16x8xf32>
    %29 = vector.shape_cast %26 : vector<16x8xf32> to vector<1x16x8xf32>
    tpu.vector_store %arg3[%c3_22, %c0_23, %c0_24], %29 {strides = array<i32>} : memref<8x16x8xf32, #tpu.memory_space<vmem>>, vector<1x16x8xf32>,
    %c4 = arith.constant 4 : index
    %c0_25 = arith.constant 0 : index
    %c0_26 = arith.constant 0 : index
    %30 = vector.load %arg2[%c4, %c0_25, %c0_26] : memref<8x8x8xf32, #tpu.memory_space<vmem>>, vector<1x8x8xf32>
    %31 = vector.shape_cast %30 : vector<1x8x8xf32> to vector<8x8xf32>
    %32 = arith.truncf %31 : vector<8x8xf32> to vector<8x8xbf16>
    %cst_27 = arith.constant dense<0.000000e+00> : vector<16x8xf32>
    %33 = tpu.matmul %1, %32, %cst_27 {dimension_numbers = #tpu.dot_dimension_numbers<[1], [0], [0], [1], [0, 0, 1, 1], [], []>} : vector<16x8xbf16>, vector<8x8xbf16>, vector<16x8xf32> -> vector<16x8xf32>
    %c4_28 = arith.constant 4 : index
    %c0_29 = arith.constant 0 : index
    %c0_30 = arith.constant 0 : index
    %34 = vector.load %arg3[%c4_28, %c0_29, %c0_30] : memref<8x16x8xf32, #tpu.memory_space<vmem>>, vector<1x16x8xf32>
    %35 = vector.shape_cast %34 : vector<1x16x8xf32> to vector<16x8xf32>
    %36 = vector.shape_cast %33 : vector<16x8xf32> to vector<1x16x8xf32>
    tpu.vector_store %arg3[%c4_28, %c0_29, %c0_30], %36 {strides = array<i32>} : memref<8x16x8xf32, #tpu.memory_space<vmem>>, vector<1x16x8xf32>,
    %c5 = arith.constant 5 : index
    %c0_31 = arith.constant 0 : index
    %c0_32 = arith.constant 0 : index
    %37 = vector.load %arg2[%c5, %c0_31, %c0_32] : memref<8x8x8xf32, #tpu.memory_space<vmem>>, vector<1x8x8xf32>
    %38 = vector.shape_cast %37 : vector<1x8x8xf32> to vector<8x8xf32>
    %39 = arith.truncf %38 : vector<8x8xf32> to vector<8x8xbf16>
    %cst_33 = arith.constant dense<0.000000e+00> : vector<16x8xf32>
    %40 = tpu.matmul %1, %39, %cst_33 {dimension_numbers = #tpu.dot_dimension_numbers<[1], [0], [0], [1], [0, 0, 1, 1], [], []>} : vector<16x8xbf16>, vector<8x8xbf16>, vector<16x8xf32> -> vector<16x8xf32>
    %c5_34 = arith.constant 5 : index
    %c0_35 = arith.constant 0 : index
    %c0_36 = arith.constant 0 : index
    %41 = vector.load %arg3[%c5_34, %c0_35, %c0_36] : memref<8x16x8xf32, #tpu.memory_space<vmem>>, vector<1x16x8xf32>
    %42 = vector.shape_cast %41 : vector<1x16x8xf32> to vector<16x8xf32>
    %43 = vector.shape_cast %40 : vector<16x8xf32> to vector<1x16x8xf32>
    tpu.vector_store %arg3[%c5_34, %c0_35, %c0_36], %43 {strides = array<i32>} : memref<8x16x8xf32, #tpu.memory_space<vmem>>, vector<1x16x8xf32>,
    %c6 = arith.constant 6 : index
    %c0_37 = arith.constant 0 : index
    %c0_38 = arith.constant 0 : index
    %44 = vector.load %arg2[%c6, %c0_37, %c0_38] : memref<8x8x8xf32, #tpu.memory_space<vmem>>, vector<1x8x8xf32>
    %45 = vector.shape_cast %44 : vector<1x8x8xf32> to vector<8x8xf32>
    %46 = arith.truncf %45 : vector<8x8xf32> to vector<8x8xbf16>
    %cst_39 = arith.constant dense<0.000000e+00> : vector<16x8xf32>
    %47 = tpu.matmul %1, %46, %cst_39 {dimension_numbers = #tpu.dot_dimension_numbers<[1], [0], [0], [1], [0, 0, 1, 1], [], []>} : vector<16x8xbf16>, vector<8x8xbf16>, vector<16x8xf32> -> vector<16x8xf32>
    %c6_40 = arith.constant 6 : index
    %c0_41 = arith.constant 0 : index
    %c0_42 = arith.constant 0 : index
    %48 = vector.load %arg3[%c6_40, %c0_41, %c0_42] : memref<8x16x8xf32, #tpu.memory_space<vmem>>, vector<1x16x8xf32>
    %49 = vector.shape_cast %48 : vector<1x16x8xf32> to vector<16x8xf32>
    %50 = vector.shape_cast %47 : vector<16x8xf32> to vector<1x16x8xf32>
    tpu.vector_store %arg3[%c6_40, %c0_41, %c0_42], %50 {strides = array<i32>} : memref<8x16x8xf32, #tpu.memory_space<vmem>>, vector<1x16x8xf32>,
    %c7 = arith.constant 7 : index
    %c0_43 = arith.constant 0 : index
    %c0_44 = arith.constant 0 : index
    %51 = vector.load %arg2[%c7, %c0_43, %c0_44] : memref<8x8x8xf32, #tpu.memory_space<vmem>>, vector<1x8x8xf32>
    %52 = vector.shape_cast %51 : vector<1x8x8xf32> to vector<8x8xf32>
    %53 = arith.truncf %52 : vector<8x8xf32> to vector<8x8xbf16>
    %cst_45 = arith.constant dense<0.000000e+00> : vector<16x8xf32>
    %54 = tpu.matmul %1, %53, %cst_45 {dimension_numbers = #tpu.dot_dimension_numbers<[1], [0], [0], [1], [0, 0, 1, 1], [], []>} : vector<16x8xbf16>, vector<8x8xbf16>, vector<16x8xf32> -> vector<16x8xf32>
    %c7_46 = arith.constant 7 : index
    %c0_47 = arith.constant 0 : index
    %c0_48 = arith.constant 0 : index
    %55 = vector.load %arg3[%c7_46, %c0_47, %c0_48] : memref<8x16x8xf32, #tpu.memory_space<vmem>>, vector<1x16x8xf32>
    %56 = vector.shape_cast %55 : vector<1x16x8xf32> to vector<16x8xf32>
    %57 = vector.shape_cast %54 : vector<16x8xf32> to vector<1x16x8xf32>
    tpu.vector_store %arg3[%c7_46, %c0_47, %c0_48], %57 {strides = array<i32>} : memref<8x16x8xf32, #tpu.memory_space<vmem>>, vector<1x16x8xf32>,
    return
  }
  func.func @transform_0(%arg0: i32) -> (i32, i32) {
    %c0_i32 = arith.constant 0 : i32
    %c0_i32_0 = arith.constant 0 : i32
    %c0_i32_1 = arith.constant 0 : i32
    return %c0_i32, %c0_i32_0 : i32, i32
  }
  func.func @transform_1(%arg0: i32) -> (i32, i32, i32) {
    %c0_i32 = arith.constant 0 : i32
    %c0_i32_0 = arith.constant 0 : i32
    %c0_i32_1 = arith.constant 0 : i32
    return %arg0, %c0_i32, %c0_i32_0 : i32, i32, i32
  }
  func.func @transform_2(%arg0: i32) -> (i32, i32, i32) {
    %c0_i32 = arith.constant 0 : i32
    %c0_i32_0 = arith.constant 0 : i32
    %c0_i32_1 = arith.constant 0 : i32
    return %arg0, %c0_i32, %c0_i32_0 : i32, i32, i32
  }
}

</mosaic_0001>

<llo_original>
// kernel: tpu_custom_call.1
$region0: #{tpu_custom_call.1}
  #allocation0 [shape = 'u32[]', space=smem, size = 0x4, offset = 0x4, fixed_abs, tag = 'smem constant byte address 0x4 - core index']
  #allocation1 [shape = 'u32[144,128]{1,0:T(1,128)}', space=vmem, size = 0x12000, scoped, tag = 'internal scratch']
  %s0 = inlined_call_operand.vmem [shape: f32[16,8], index: 0, kind: input, shape index: {}]
  %s1 = inlined_call_operand.vmem [shape: f32[16,8,8], index: 1, kind: input, shape index: {}]
  %s2 = inlined_call_operand.vmem [shape: f32[16,16,8], index: 2, kind: output, shape index: {}]
  %s3 = sld [smem:[#allocation0]]
  $region41: #{tpu_custom_call.1} parent=0
    _
  %s5 = ssub.s32 1, %s3
  %s6 = scalar_select 0, %s5, %s3
  loop: start=0, step=1, limit=4
  $region2: #{tpu_custom_call.1} parent=0 // loop_pre_header
    _
  $region3: #{tpu_custom_call.1} parent=0 // loop_header
    %s8 = sphi 0, %s12
    %p9 = scmp.ge.s32.totalorder %s8, 4
    %s16 = sphi 0, %s16
    %s18 = sphi 0, %s16
    %s19 = sphi 0, %s18
    %s33 = sphi 0, %s19
    %s39 = sphi 0, %s41
    %s42 = sphi 0, %s39
    %s43 = sphi 0, %s42
    %s59 = sphi 0, %s43
    %s65 = sphi 0, %s67
    %s68 = sphi 0, %s65
    %s69 = sphi 0, %s68
    %s85 = sphi 0, %s69
  $region4: #{tpu_custom_call.1} parent=0 // loop_header_branch
    %11 = sbr.rel (%p9) target = $region8
  $region5: #{tpu_custom_call.1} parent=0 // loop_body
    %s13 = ssub.s32 %s8, 1
    %s14 = ssub.s32 %s8, 2
    %s15 = sadd.s32 %s8, 1
    %s17 = sadd.s32 %s16, 1
    %p20 = scmp.eq.s32.totalorder %s8, 1
    %p21 = scmp.ne.s32.totalorder %s16, %s18
    %p22 = scmp.eq.s32.totalorder %s8, 0
    %p23 = por %p21, %p22
    %p24 = scmp.ne.s32.totalorder %s16, %s18
    %p25 = scmp.eq.s32.totalorder %s13, 1
    %p26 = por %p24, %p25
    %p27 = scmp.ne.s32.totalorder %s18, %s19
    %p28 = scmp.eq.s32.totalorder %s13, 0
    %p29 = por %p27, %p28
    %p30 = scmp.ne.s32.totalorder %s18, %s19
    %p31 = scmp.eq.s32.totalorder %s14, 1
    %p32 = por %p30, %p31
    %p34 = scmp.ne.s32.totalorder %s19, %s33
    %p35 = scmp.eq.s32.totalorder %s14, 0
    %p36 = por %p34, %p35
    %s37 = ssub.s32 %s8, %s15
    %p38 = scmp.eq.s32.totalorder %s37, 0
    %s40 = sadd.s32 %s39, 1
    %s41 = scalar_select %p38, %s39, %s40
    %p44 = pneg %p38
    %p45 = scmp.eq.s32.totalorder %s8, 1
    %p46 = por %p44, %p45
    %p47 = scmp.ne.s32.totalorder %s39, %s42
    %p48 = scmp.eq.s32.totalorder %s8, 0
    %p49 = por %p47, %p48
    %p50 = scmp.ne.s32.totalorder %s39, %s42
    %p51 = scmp.eq.s32.totalorder %s13, 1
    %p52 = por %p50, %p51
    %p53 = scmp.ne.s32.totalorder %s42, %s43
    %p54 = scmp.eq.s32.totalorder %s13, 0
    %p55 = por %p53, %p54
    %p56 = scmp.ne.s32.totalorder %s42, %s43
    %p57 = scmp.eq.s32.totalorder %s14, 1
    %p58 = por %p56, %p57
    %p60 = scmp.ne.s32.totalorder %s43, %s59
    %p61 = scmp.eq.s32.totalorder %s14, 0
    %p62 = por %p60, %p61
    %s63 = ssub.s32 %s8, %s15
    %p64 = scmp.eq.s32.totalorder %s63, 0
    %s66 = sadd.s32 %s65, 1
    %s67 = scalar_select %p64, %s65, %s66
    %p70 = pneg %p64
    %p71 = scmp.eq.s32.totalorder %s8, 1
    %p72 = por %p70, %p71
    %p73 = scmp.ne.s32.totalorder %s65, %s68
    %p74 = scmp.eq.s32.totalorder %s8, 0
    %p75 = por %p73, %p74
    %p76 = scmp.ne.s32.totalorder %s65, %s68
    %p77 = scmp.eq.s32.totalorder %s13, 1
    %p78 = por %p76, %p77
    %p79 = scmp.ne.s32.totalorder %s68, %s69
    %p80 = scmp.eq.s32.totalorder %s13, 0
    %p81 = por %p79, %p80
    %p82 = scmp.ne.s32.totalorder %s68, %s69
    %p83 = scmp.eq.s32.totalorder %s14, 1
    %p84 = por %p82, %p83
    %p86 = scmp.ne.s32.totalorder %s69, %s85
    %p87 = scmp.eq.s32.totalorder %s14, 0
    %p88 = por %p86, %p87
    %p89 = scmp.le.s32.totalorder 1, %s8
    %p90 = scmp.lt.s32.totalorder %s8, 3
    %p91 = pnand %p89, %p90
    %p92 = pneg %p91
    // Predicated region
    $region9: #{tpu_custom_call.1} parent=5 // pred_check
      _
    $region10: #{tpu_custom_call.1} parent=5 // pred_check_branch
      %94 = sbr.rel (%p91) target = $region12
    $region11: #{tpu_custom_call.1} parent=5 // pred_region
      %s95 = ssub.s32 %s8, 1
      // Predicated region
      $region13: #{tpu_custom_call.1} parent=11 // pred_check
        %p96 = pneg %p29
      $region14: #{tpu_custom_call.1} parent=11 // pred_check_branch
        %98 = sbr.rel (%p96) target = $region16
      $region15: #{tpu_custom_call.1} parent=11 // pred_region
        _
      $region16: #{tpu_custom_call.1} parent=11 // pred_fallthru
        _
    $region12: #{tpu_custom_call.1} parent=5 // pred_fallthru
      _
    %p99 = scmp.lt.s32.totalorder %s8, 2
    // Predicated region
    $region17: #{tpu_custom_call.1} parent=5 // pred_check
      %p100 = pneg %p99
    $region18: #{tpu_custom_call.1} parent=5 // pred_check_branch
      %102 = sbr.rel (%p100) target = $region20
    $region19: #{tpu_custom_call.1} parent=5 // pred_region
      // Predicated region
      $region21: #{tpu_custom_call.1} parent=19 // pred_check
        %p103 = pneg %p49
      $region22: #{tpu_custom_call.1} parent=19 // pred_check_branch
        %105 = sbr.rel (%p103) target = $region24
      $region23: #{tpu_custom_call.1} parent=19 // pred_region
        %s106 = smul.u32 8, %s8
        %p107 = scmp.lt.s32.totalorder %s106, 15
        %s108 = scalar_select %p107, %s106, 15
        %s109 = smul.addr %s108, 8
        %s110 = scalar_lea.vmem %s1, %s109
        %s111 = smul.u32 8, %s8
      $region24: #{tpu_custom_call.1} parent=19 // pred_fallthru
        _
    $region20: #{tpu_custom_call.1} parent=5 // pred_fallthru
      _
    %p112 = scmp.le.s32.totalorder 1, %s8
    %p113 = scmp.lt.s32.totalorder %s8, 3
    %p114 = pnand %p112, %p113
    %p115 = pneg %p114
    // Predicated region
    $region25: #{tpu_custom_call.1} parent=5 // pred_check
      _
    $region26: #{tpu_custom_call.1} parent=5 // pred_check_branch
      %117 = sbr.rel (%p114) target = $region28
    $region27: #{tpu_custom_call.1} parent=5 // pred_region
      %s118 = ssub.s32 %s8, 1
      %p119 = pneg %p29
      %p120 = pneg %p26
      %s121 = smul.u32 8, %s13
      %p122 = scmp.lt.s32.totalorder %s121, 15
      %s123 = scalar_select %p122, %s121, 15
      %s124 = smul.addr %s123, 8
      %s125 = scalar_lea.vmem %s1, %s124
      %p126 = pneg %p55
      %p127 = pneg %p52
      %p128 = pneg %p81
      %p129 = pneg %p78
      %s130 = smul.u32 8, %s13
      %p131 = scmp.lt.s32.totalorder %s130, 15
      %s132 = scalar_select %p131, %s130, 15
      %s133 = smul.addr %s132, 2
      %s134 = smul.addr %s133, 8
      %s135 = scalar_lea.vmem %s2, %s134
      %s136 = smul.u32 8, %s13
      %p137 = scmp.lt.s32.totalorder %s136, 15
      %s138 = scalar_select %p137, %s136, 15
      %s139 = smul.addr %s138, 8
      %s140 = scalar_lea.vmem %s1, %s139
      %s141 = smul.u32 8, %s13
      %s142 = smul.u32 8, %s13
      %p143 = scmp.lt.s32.totalorder %s142, 15
      %s144 = scalar_select %p143, %s142, 15
      %s145 = smul.addr %s144, 2
      %s146 = smul.addr %s145, 8
      %s147 = scalar_lea.vmem %s2, %s146
      %s148 = smul.u32 8, %s13
      %v150 = vld [vmem:[%s0] sm:$0xff]
      %v151 = vld [vmem:[%s0 + $0x8] sm:$0xff]
      %v152 = vpack.c.bf16 %v151, %v150
      %v153 = vld [vmem:[%s140] sm:$0xff]
      %v154 = vpack.c.bf16 %v153, %v153
      %vm155 = vcmask 64512
      %v157 = vsel %vm155, %v152, 0
      %vm159 = vcmask 1043456
      %v161 = vsel %vm159, %v154, 0
      %163 = vmatprep.subr.bf16.mxu0 0
      %164 = vmatpush1.bf16.msra.mxu0 %v161
      %165 = vmatprep.subr.bf16.mxu0 0
      %166 = vmatpush1.bf16.msra.mxu0 0
      %167 = vmatprep.subr.bf16.mxu0 0
      %168 = vmatpush1.bf16.msra.mxu0 0
      %169 = vmatprep.subr.bf16.mxu0 0
      %170 = vmatpush1.bf16.msra.mxu0 0
      %171 = vmatprep.subr.bf16.mxu0 0
      %172 = vmatpush1.bf16.msra.mxu0 0
      %173 = vmatprep.subr.bf16.mxu0 0
      %174 = vmatpush1.bf16.msra.mxu0 0
      %175 = vmatprep.subr.bf16.mxu0 0
      %176 = vmatpush1.bf16.msra.mxu0 0
      %177 = vmatprep.subr.bf16.mxu0 0
      %178 = vmatpush1.bf16.msra.mxu0 0
      %179 = vmatprep.subr.bf16.mxu0 0
      %180 = vmatpush1.bf16.msra.mxu0 0
      %181 = vmatprep.subr.bf16.mxu0 0
      %182 = vmatpush1.bf16.msra.mxu0 0
      %183 = vmatprep.subr.bf16.mxu0 0
      %184 = vmatpush1.bf16.msra.mxu0 0
      %185 = vmatprep.subr.bf16.mxu0 0
      %186 = vmatpush1.bf16.msra.mxu0 0
      %187 = vmatprep.subr.bf16.mxu0 0
      %188 = vmatpush1.bf16.msra.mxu0 0
      %189 = vmatprep.subr.bf16.mxu0 0
      %190 = vmatpush1.bf16.msra.mxu0 0
      %191 = vmatprep.subr.bf16.mxu0 0
      %192 = vmatpush1.bf16.msra.mxu0 0
      %193 = vmatprep.subr.bf16.mxu0 0
      %194 = vmatpush1.bf16.msra.mxu0 0
      %195 = vmatprep.mubr.bf16.mxu0 0
      %196 = vmatmul.mubr.bf16.gmra.mrb[0].mxu0 %v157
      %v197 = vpop.f32.mrb[0].mxu0
      %v198 = vadd.f32 0.0, %v197
      %v199 = vpop.f32.mrb[0].mxu0
      %v200 = vpop.f32.mrb[0].mxu0
      %v201 = vadd.f32 0.0, %v200
      %v202 = vpop.f32.mrb[0].mxu0
      %203 = vdwg.mxu0
      %204 = vst.msk [vmem:[%s147] sm:$0xff] %vm155, %v198
      %205 = vst.msk [vmem:[%s147 + $0x8] sm:$0xff] %vm155, %v201
      %s206 = scalar_lea.vmem %s140, 8
      %v207 = vld [vmem:[%s206] sm:$0xff]
      %v208 = vpack.c.bf16 %v207, %v207
      %v210 = vsel %vm159, %v208, 0
      %212 = vmatprep.subr.bf16.mxu0 0
      %213 = vmatpush1.bf16.msra.mxu0 %v210
      %214 = vmatprep.subr.bf16.mxu0 0
      %215 = vmatpush1.bf16.msra.mxu0 0
      %216 = vmatprep.subr.bf16.mxu0 0
      %217 = vmatpush1.bf16.msra.mxu0 0
      %218 = vmatprep.subr.bf16.mxu0 0
      %219 = vmatpush1.bf16.msra.mxu0 0
      %220 = vmatprep.subr.bf16.mxu0 0
      %221 = vmatpush1.bf16.msra.mxu0 0
      %222 = vmatprep.subr.bf16.mxu0 0
      %223 = vmatpush1.bf16.msra.mxu0 0
      %224 = vmatprep.subr.bf16.mxu0 0
      %225 = vmatpush1.bf16.msra.mxu0 0
      %226 = vmatprep.subr.bf16.mxu0 0
      %227 = vmatpush1.bf16.msra.mxu0 0
      %228 = vmatprep.subr.bf16.mxu0 0
      %229 = vmatpush1.bf16.msra.mxu0 0
      %230 = vmatprep.subr.bf16.mxu0 0
      %231 = vmatpush1.bf16.msra.mxu0 0
      %232 = vmatprep.subr.bf16.mxu0 0
      %233 = vmatpush1.bf16.msra.mxu0 0
      %234 = vmatprep.subr.bf16.mxu0 0
      %235 = vmatpush1.bf16.msra.mxu0 0
      %236 = vmatprep.subr.bf16.mxu0 0
      %237 = vmatpush1.bf16.msra.mxu0 0
      %238 = vmatprep.subr.bf16.mxu0 0
      %239 = vmatpush1.bf16.msra.mxu0 0
      %240 = vmatprep.subr.bf16.mxu0 0
      %241 = vmatpush1.bf16.msra.mxu0 0
      %242 = vmatprep.subr.bf16.mxu0 0
      %243 = vmatpush1.bf16.msra.mxu0 0
      %244 = vmatprep.mubr.bf16.mxu0 0
      %245 = vmatmul.mubr.bf16.gmra.mrb[0].mxu0 %v157
      %v246 = vpop.f32.mrb[0].mxu0
      %v247 = vadd.f32 0.0, %v246
      %v248 = vpop.f32.mrb[0].mxu0
      %v249 = vpop.f32.mrb[0].mxu0
      %v250 = vadd.f32 0.0, %v249
      %v251 = vpop.f32.mrb[0].mxu0
      %252 = vdwg.mxu0
      %s253 = scalar_lea.vmem %s147, 16
      %254 = vst.msk [vmem:[%s253] sm:$0xff] %vm155, %v247
      %255 = vst.msk [vmem:[%s253 + $0x8] sm:$0xff] %vm155, %v250
      %s256 = scalar_lea.vmem %s140, 16
      %v257 = vld [vmem:[%s256] sm:$0xff]
      %v258 = vpack.c.bf16 %v257, %v257
      %v260 = vsel %vm159, %v258, 0
      %262 = vmatprep.subr.bf16.mxu0 0
      %263 = vmatpush1.bf16.msra.mxu0 %v260
      %264 = vmatprep.subr.bf16.mxu0 0
      %265 = vmatpush1.bf16.msra.mxu0 0
      %266 = vmatprep.subr.bf16.mxu0 0
      %267 = vmatpush1.bf16.msra.mxu0 0
      %268 = vmatprep.subr.bf16.mxu0 0
      %269 = vmatpush1.bf16.msra.mxu0 0
      %270 = vmatprep.subr.bf16.mxu0 0
      %271 = vmatpush1.bf16.msra.mxu0 0
      %272 = vmatprep.subr.bf16.mxu0 0
      %273 = vmatpush1.bf16.msra.mxu0 0
      %274 = vmatprep.subr.bf16.mxu0 0
      %275 = vmatpush1.bf16.msra.mxu0 0
      %276 = vmatprep.subr.bf16.mxu0 0
      %277 = vmatpush1.bf16.msra.mxu0 0
      %278 = vmatprep.subr.bf16.mxu0 0
      %279 = vmatpush1.bf16.msra.mxu0 0
      %280 = vmatprep.subr.bf16.mxu0 0
      %281 = vmatpush1.bf16.msra.mxu0 0
      %282 = vmatprep.subr.bf16.mxu0 0
      %283 = vmatpush1.bf16.msra.mxu0 0
      %284 = vmatprep.subr.bf16.mxu0 0
      %285 = vmatpush1.bf16.msra.mxu0 0
      %286 = vmatprep.subr.bf16.mxu0 0
      %287 = vmatpush1.bf16.msra.mxu0 0
      %288 = vmatprep.subr.bf16.mxu0 0
      %289 = vmatpush1.bf16.msra.mxu0 0
      %290 = vmatprep.subr.bf16.mxu0 0
      %291 = vmatpush1.bf16.msra.mxu0 0
      %292 = vmatprep.subr.bf16.mxu0 0
      %293 = vmatpush1.bf16.msra.mxu0 0
      %294 = vmatprep.mubr.bf16.mxu0 0
      %295 = vmatmul.mubr.bf16.gmra.mrb[0].mxu0 %v157
      %v296 = vpop.f32.mrb[0].mxu0
      %v297 = vadd.f32 0.0, %v296
      %v298 = vpop.f32.mrb[0].mxu0
      %v299 = vpop.f32.mrb[0].mxu0
      %v300 = vadd.f32 0.0, %v299
      %v301 = vpop.f32.mrb[0].mxu0
      %302 = vdwg.mxu0
      %s303 = scalar_lea.vmem %s147, 32
      %304 = vst.msk [vmem:[%s303] sm:$0xff] %vm155, %v297
      %305 = vst.msk [vmem:[%s303 + $0x8] sm:$0xff] %vm155, %v300
      %s306 = scalar_lea.vmem %s140, 24
      %v307 = vld [vmem:[%s306] sm:$0xff]
      %v308 = vpack.c.bf16 %v307, %v307
      %v310 = vsel %vm159, %v308, 0
      %312 = vmatprep.subr.bf16.mxu0 0
      %313 = vmatpush1.bf16.msra.mxu0 %v310
      %314 = vmatprep.subr.bf16.mxu0 0
      %315 = vmatpush1.bf16.msra.mxu0 0
      %316 = vmatprep.subr.bf16.mxu0 0
      %317 = vmatpush1.bf16.msra.mxu0 0
      %318 = vmatprep.subr.bf16.mxu0 0
      %319 = vmatpush1.bf16.msra.mxu0 0
      %320 = vmatprep.subr.bf16.mxu0 0
      %321 = vmatpush1.bf16.msra.mxu0 0
      %322 = vmatprep.subr.bf16.mxu0 0
      %323 = vmatpush1.bf16.msra.mxu0 0
      %324 = vmatprep.subr.bf16.mxu0 0
      %325 = vmatpush1.bf16.msra.mxu0 0
      %326 = vmatprep.subr.bf16.mxu0 0
      %327 = vmatpush1.bf16.msra.mxu0 0
      %328 = vmatprep.subr.bf16.mxu0 0
      %329 = vmatpush1.bf16.msra.mxu0 0
      %330 = vmatprep.subr.bf16.mxu0 0
      %331 = vmatpush1.bf16.msra.mxu0 0
      %332 = vmatprep.subr.bf16.mxu0 0
      %333 = vmatpush1.bf16.msra.mxu0 0
      %334 = vmatprep.subr.bf16.mxu0 0
      %335 = vmatpush1.bf16.msra.mxu0 0
      %336 = vmatprep.subr.bf16.mxu0 0
      %337 = vmatpush1.bf16.msra.mxu0 0
      %338 = vmatprep.subr.bf16.mxu0 0
      %339 = vmatpush1.bf16.msra.mxu0 0
      %340 = vmatprep.subr.bf16.mxu0 0
      %341 = vmatpush1.bf16.msra.mxu0 0
      %342 = vmatprep.subr.bf16.mxu0 0
      %343 = vmatpush1.bf16.msra.mxu0 0
      %344 = vmatprep.mubr.bf16.mxu0 0
      %345 = vmatmul.mubr.bf16.gmra.mrb[0].mxu0 %v157
      %v346 = vpop.f32.mrb[0].mxu0
      %v347 = vadd.f32 0.0, %v346
      %v348 = vpop.f32.mrb[0].mxu0
      %v349 = vpop.f32.mrb[0].mxu0
      %v350 = vadd.f32 0.0, %v349
      %v351 = vpop.f32.mrb[0].mxu0
      %352 = vdwg.mxu0
      %s353 = scalar_lea.vmem %s147, 48
      %354 = vst.msk [vmem:[%s353] sm:$0xff] %vm155, %v347
      %355 = vst.msk [vmem:[%s353 + $0x8] sm:$0xff] %vm155, %v350
      %s356 = scalar_lea.vmem %s140, 32
      %v357 = vld [vmem:[%s356] sm:$0xff]
      %v358 = vpack.c.bf16 %v357, %v357
      %v360 = vsel %vm159, %v358, 0
      %362 = vmatprep.subr.bf16.mxu0 0
      %363 = vmatpush1.bf16.msra.mxu0 %v360
      %364 = vmatprep.subr.bf16.mxu0 0
      %365 = vmatpush1.bf16.msra.mxu0 0
      %366 = vmatprep.subr.bf16.mxu0 0
      %367 = vmatpush1.bf16.msra.mxu0 0
      %368 = vmatprep.subr.bf16.mxu0 0
      %369 = vmatpush1.bf16.msra.mxu0 0
      %370 = vmatprep.subr.bf16.mxu0 0
      %371 = vmatpush1.bf16.msra.mxu0 0
      %372 = vmatprep.subr.bf16.mxu0 0
      %373 = vmatpush1.bf16.msra.mxu0 0
      %374 = vmatprep.subr.bf16.mxu0 0
      %375 = vmatpush1.bf16.msra.mxu0 0
      %376 = vmatprep.subr.bf16.mxu0 0
      %377 = vmatpush1.bf16.msra.mxu0 0
      %378 = vmatprep.subr.bf16.mxu0 0
      %379 = vmatpush1.bf16.msra.mxu0 0
      %380 = vmatprep.subr.bf16.mxu0 0
      %381 = vmatpush1.bf16.msra.mxu0 0
      %382 = vmatprep.subr.bf16.mxu0 0
      %383 = vmatpush1.bf16.msra.mxu0 0
      %384 = vmatprep.subr.bf16.mxu0 0
      %385 = vmatpush1.bf16.msra.mxu0 0
      %386 = vmatprep.subr.bf16.mxu0 0
      %387 = vmatpush1.bf16.msra.mxu0 0
      %388 = vmatprep.subr.bf16.mxu0 0
      %389 = vmatpush1.bf16.msra.mxu0 0
      %390 = vmatprep.subr.bf16.mxu0 0
      %391 = vmatpush1.bf16.msra.mxu0 0
      %392 = vmatprep.subr.bf16.mxu0 0
      %393 = vmatpush1.bf16.msra.mxu0 0
      %394 = vmatprep.mubr.bf16.mxu0 0
      %395 = vmatmul.mubr.bf16.gmra.mrb[0].mxu0 %v157
      %v396 = vpop.f32.mrb[0].mxu0
      %v397 = vadd.f32 0.0, %v396
      %v398 = vpop.f32.mrb[0].mxu0
      %v399 = vpop.f32.mrb[0].mxu0
      %v400 = vadd.f32 0.0, %v399
      %v401 = vpop.f32.mrb[0].mxu0
      %402 = vdwg.mxu0
      %s403 = scalar_lea.vmem %s147, 64
      %404 = vst.msk [vmem:[%s403] sm:$0xff] %vm155, %v397
      %405 = vst.msk [vmem:[%s403 + $0x8] sm:$0xff] %vm155, %v400
      %s406 = scalar_lea.vmem %s140, 40
      %v407 = vld [vmem:[%s406] sm:$0xff]
      %v408 = vpack.c.bf16 %v407, %v407
      %v410 = vsel %vm159, %v408, 0
      %412 = vmatprep.subr.bf16.mxu0 0
      %413 = vmatpush1.bf16.msra.mxu0 %v410
      %414 = vmatprep.subr.bf16.mxu0 0
      %415 = vmatpush1.bf16.msra.mxu0 0
      %416 = vmatprep.subr.bf16.mxu0 0
      %417 = vmatpush1.bf16.msra.mxu0 0
      %418 = vmatprep.subr.bf16.mxu0 0
      %419 = vmatpush1.bf16.msra.mxu0 0
      %420 = vmatprep.subr.bf16.mxu0 0
      %421 = vmatpush1.bf16.msra.mxu0 0
      %422 = vmatprep.subr.bf16.mxu0 0
      %423 = vmatpush1.bf16.msra.mxu0 0
      %424 = vmatprep.subr.bf16.mxu0 0
      %425 = vmatpush1.bf16.msra.mxu0 0
      %426 = vmatprep.subr.bf16.mxu0 0
      %427 = vmatpush1.bf16.msra.mxu0 0
      %428 = vmatprep.subr.bf16.mxu0 0
      %429 = vmatpush1.bf16.msra.mxu0 0
      %430 = vmatprep.subr.bf16.mxu0 0
      %431 = vmatpush1.bf16.msra.mxu0 0
      %432 = vmatprep.subr.bf16.mxu0 0
      %433 = vmatpush1.bf16.msra.mxu0 0
      %434 = vmatprep.subr.bf16.mxu0 0
      %435 = vmatpush1.bf16.msra.mxu0 0
      %436 = vmatprep.subr.bf16.mxu0 0
      %437 = vmatpush1.bf16.msra.mxu0 0
      %438 = vmatprep.subr.bf16.mxu0 0
      %439 = vmatpush1.bf16.msra.mxu0 0
      %440 = vmatprep.subr.bf16.mxu0 0
      %441 = vmatpush1.bf16.msra.mxu0 0
      %442 = vmatprep.subr.bf16.mxu0 0
      %443 = vmatpush1.bf16.msra.mxu0 0
      %444 = vmatprep.mubr.bf16.mxu0 0
      %445 = vmatmul.mubr.bf16.gmra.mrb[0].mxu0 %v157
      %v446 = vpop.f32.mrb[0].mxu0
      %v447 = vadd.f32 0.0, %v446
      %v448 = vpop.f32.mrb[0].mxu0
      %v449 = vpop.f32.mrb[0].mxu0
      %v450 = vadd.f32 0.0, %v449
      %v451 = vpop.f32.mrb[0].mxu0
      %452 = vdwg.mxu0
      %s453 = scalar_lea.vmem %s147, 80
      %454 = vst.msk [vmem:[%s453] sm:$0xff] %vm155, %v447
      %455 = vst.msk [vmem:[%s453 + $0x8] sm:$0xff] %vm155, %v450
      %s456 = scalar_lea.vmem %s140, 48
      %v457 = vld [vmem:[%s456] sm:$0xff]
      %v458 = vpack.c.bf16 %v457, %v457
      %v460 = vsel %vm159, %v458, 0
      %462 = vmatprep.subr.bf16.mxu0 0
      %463 = vmatpush1.bf16.msra.mxu0 %v460
      %464 = vmatprep.subr.bf16.mxu0 0
      %465 = vmatpush1.bf16.msra.mxu0 0
      %466 = vmatprep.subr.bf16.mxu0 0
      %467 = vmatpush1.bf16.msra.mxu0 0
      %468 = vmatprep.subr.bf16.mxu0 0
      %469 = vmatpush1.bf16.msra.mxu0 0
      %470 = vmatprep.subr.bf16.mxu0 0
      %471 = vmatpush1.bf16.msra.mxu0 0
      %472 = vmatprep.subr.bf16.mxu0 0
      %473 = vmatpush1.bf16.msra.mxu0 0
      %474 = vmatprep.subr.bf16.mxu0 0
      %475 = vmatpush1.bf16.msra.mxu0 0
      %476 = vmatprep.subr.bf16.mxu0 0
      %477 = vmatpush1.bf16.msra.mxu0 0
      %478 = vmatprep.subr.bf16.mxu0 0
      %479 = vmatpush1.bf16.msra.mxu0 0
      %480 = vmatprep.subr.bf16.mxu0 0
      %481 = vmatpush1.bf16.msra.mxu0 0
      %482 = vmatprep.subr.bf16.mxu0 0
      %483 = vmatpush1.bf16.msra.mxu0 0
      %484 = vmatprep.subr.bf16.mxu0 0
      %485 = vmatpush1.bf16.msra.mxu0 0
      %486 = vmatprep.subr.bf16.mxu0 0
      %487 = vmatpush1.bf16.msra.mxu0 0
      %488 = vmatprep.subr.bf16.mxu0 0
      %489 = vmatpush1.bf16.msra.mxu0 0
      %490 = vmatprep.subr.bf16.mxu0 0
      %491 = vmatpush1.bf16.msra.mxu0 0
      %492 = vmatprep.subr.bf16.mxu0 0
      %493 = vmatpush1.bf16.msra.mxu0 0
      %494 = vmatprep.mubr.bf16.mxu0 0
      %495 = vmatmul.mubr.bf16.gmra.mrb[0].mxu0 %v157
      %v496 = vpop.f32.mrb[0].mxu0
      %v497 = vadd.f32 0.0, %v496
      %v498 = vpop.f32.mrb[0].mxu0
      %v499 = vpop.f32.mrb[0].mxu0
      %v500 = vadd.f32 0.0, %v499
      %v501 = vpop.f32.mrb[0].mxu0
      %502 = vdwg.mxu0
      %s503 = scalar_lea.vmem %s147, 96
      %504 = vst.msk [vmem:[%s503] sm:$0xff] %vm155, %v497
      %505 = vst.msk [vmem:[%s503 + $0x8] sm:$0xff] %vm155, %v500
      %s506 = scalar_lea.vmem %s140, 56
      %v507 = vld [vmem:[%s506] sm:$0xff]
      %v508 = vpack.c.bf16 %v507, %v507
      %v510 = vsel %vm159, %v508, 0
      %512 = vmatprep.subr.bf16.mxu0 0
      %513 = vmatpush1.bf16.msra.mxu0 %v510
      %514 = vmatprep.subr.bf16.mxu0 0
      %515 = vmatpush1.bf16.msra.mxu0 0
      %516 = vmatprep.subr.bf16.mxu0 0
      %517 = vmatpush1.bf16.msra.mxu0 0
      %518 = vmatprep.subr.bf16.mxu0 0
      %519 = vmatpush1.bf16.msra.mxu0 0
      %520 = vmatprep.subr.bf16.mxu0 0
      %521 = vmatpush1.bf16.msra.mxu0 0
      %522 = vmatprep.subr.bf16.mxu0 0
      %523 = vmatpush1.bf16.msra.mxu0 0
      %524 = vmatprep.subr.bf16.mxu0 0
      %525 = vmatpush1.bf16.msra.mxu0 0
      %526 = vmatprep.subr.bf16.mxu0 0
      %527 = vmatpush1.bf16.msra.mxu0 0
      %528 = vmatprep.subr.bf16.mxu0 0
      %529 = vmatpush1.bf16.msra.mxu0 0
      %530 = vmatprep.subr.bf16.mxu0 0
      %531 = vmatpush1.bf16.msra.mxu0 0
      %532 = vmatprep.subr.bf16.mxu0 0
      %533 = vmatpush1.bf16.msra.mxu0 0
      %534 = vmatprep.subr.bf16.mxu0 0
      %535 = vmatpush1.bf16.msra.mxu0 0
      %536 = vmatprep.subr.bf16.mxu0 0
      %537 = vmatpush1.bf16.msra.mxu0 0
      %538 = vmatprep.subr.bf16.mxu0 0
      %539 = vmatpush1.bf16.msra.mxu0 0
      %540 = vmatprep.subr.bf16.mxu0 0
      %541 = vmatpush1.bf16.msra.mxu0 0
      %542 = vmatprep.subr.bf16.mxu0 0
      %543 = vmatpush1.bf16.msra.mxu0 0
      %544 = vmatprep.mubr.bf16.mxu0 0
      %545 = vmatmul.mubr.bf16.gmra.mrb[0].mxu0 %v157
      %v546 = vpop.f32.mrb[0].mxu0
      %v547 = vadd.f32 0.0, %v546
      %v548 = vpop.f32.mrb[0].mxu0
      %v549 = vpop.f32.mrb[0].mxu0
      %v550 = vadd.f32 0.0, %v549
      %v551 = vpop.f32.mrb[0].mxu0
      %552 = vdwg.mxu0
      %s553 = scalar_lea.vmem %s147, 112
      %554 = vst.msk [vmem:[%s553] sm:$0xff] %vm155, %v547
      %555 = vst.msk [vmem:[%s553 + $0x8] sm:$0xff] %vm155, %v550
      %s556 = smul.u32 8, %s13
      %p557 = scmp.lt.s32.totalorder %s556, 15
      %s558 = scalar_select %p557, %s556, 15
      %s559 = smul.addr %s558, 2
      %s560 = smul.addr %s559, 8
      %s561 = scalar_lea.vmem %s2, %s560
      // Predicated region
      $region29: #{tpu_custom_call.1} parent=27 // pred_check
        %p562 = pneg %p78
      $region30: #{tpu_custom_call.1} parent=27 // pred_check_branch
        %564 = sbr.rel (%p562) target = $region32
      $region31: #{tpu_custom_call.1} parent=27 // pred_region
        %s565 = smul.u32 8, %s13
      $region32: #{tpu_custom_call.1} parent=27 // pred_fallthru
        _
    $region28: #{tpu_custom_call.1} parent=5 // pred_fallthru
      _
    %p566 = scmp.le.s32.totalorder 2, %s8
    // Predicated region
    $region33: #{tpu_custom_call.1} parent=5 // pred_check
      %p567 = pneg %p566
    $region34: #{tpu_custom_call.1} parent=5 // pred_check_branch
      %569 = sbr.rel (%p567) target = $region36
    $region35: #{tpu_custom_call.1} parent=5 // pred_region
      %s570 = ssub.s32 %s8, 2
      // Predicated region
      $region37: #{tpu_custom_call.1} parent=35 // pred_check
        %p571 = pneg %p84
      $region38: #{tpu_custom_call.1} parent=35 // pred_check_branch
        %573 = sbr.rel (%p571) target = $region40
      $region39: #{tpu_custom_call.1} parent=35 // pred_region
        %s574 = smul.u32 8, %s14
        %p575 = scmp.lt.s32.totalorder %s574, 15
        %s576 = scalar_select %p575, %s574, 15
        %s577 = smul.addr %s576, 2
        %s578 = smul.addr %s577, 8
        %s579 = scalar_lea.vmem %s2, %s578
      $region40: #{tpu_custom_call.1} parent=35 // pred_fallthru
        _
    $region36: #{tpu_custom_call.1} parent=5 // pred_fallthru
      _
  $region6: #{tpu_custom_call.1} parent=0 // loop_footer
    %s12 = sadd.s32 1, %s8
  $region7: #{tpu_custom_call.1} parent=0 // loop_footer_branch
    %7 = sbr.rel target = $region3
  $region8: #{tpu_custom_call.1} parent=0 // loop_exit
    _

</llo_original>
